<compile_context>
chip_gen: v5e
topology: v5e:2x2
jax: 0.10.0
libtpu: 0.0.40
codegen_flags: <defaults>
</compile_context>

<pallas_src>
import jax
import jax.numpy as jnp
from jax.experimental import pallas as pl
from jax.experimental.pallas import tpu as pltpu


def _round_up(x, m):
    return ((x + m - 1) // m) * m


def _round_down(x, m):
    return (x // m) * m


def _vmem_capacity_bytes():
    """Per-generation VMEM capacity (v5e/v6e: 128 MiB, v7x: 64 MiB). Conservative fallback."""
    try:
        info = pltpu.get_tpu_info()
        for name in ("vmem_capacity_bytes", "vmem_size_bytes", "vmem_bytes"):
            cap = getattr(info, name, None)
            if cap:
                return int(cap)
    except Exception:
        pass
    return 64 * 1024 * 1024  # v7x-sized fallback: safe on every generation


def _pick_tile_b(B, C_pad, itemsize, sub, max_buf_bytes):
    """Largest sublane-aligned row tile fitting one pipeline buffer in the byte budget."""
    b_sub = _round_up(B, sub)
    cap = max(sub, _round_down(max_buf_bytes // max(C_pad * itemsize, 1), sub))
    if b_sub <= cap:
        # Whole (sublane-padded) batch in a single tile: best for small inputs
        # (avoids per-step pipeline overhead entirely).
        return b_sub
    # Budget-bound: prefer a tile that divides b_sub (no extra row padding) unless it is
    # much smaller than what the budget allows, in which case pad B up to the budget tile.
    best_div = None
    for t in (8192, 4096, 2048, 1024, 512, 256, 128, 64, 32, 16, 8):
        if t <= cap and t % sub == 0 and b_sub % t == 0:
            best_div = t
            break
    if best_div is not None and best_div * 4 >= cap:
        return best_div
    return cap


def _build_kernel(C_pad, tile_b, inv_denom):
    """Streaming reduction kernel over the (padded) [B, C] score matrix."""
    groups = tile_b // 8  # tile_b is always a multiple of 8 (wrapper pads B)

    def kernel(x_ref, out_ref, acc_ref):
        i = pl.program_id(1)

        @pl.when(i == 0)
        def _init():
            acc_ref[...] = jnp.zeros_like(acc_ref)

        # KLDivLoss pointwise term with an all-zero target:
        #   xlogy(t, t) - t * log_softmax(x)  ==  0 * x   for every finite x,
        # and 0 * x propagates NaN/Inf exactly like the full chain would.
        # Perf review item 1: the exp/log chain is dead work multiplied by a
        # compile-time-zero target, so it is removed -> pure VALU streaming reduction.
        x = x_ref[...].astype(jnp.float32)                 # (tile_b, C_pad)
        pointwise = 0.0 * x
        # Lane-dense accumulation: fold 8-row groups into the resident (8, C_pad)
        # accumulator with plain VALU adds; the single cross-lane/sublane (XLU)
        # reduce happens exactly once, in the finalize branch.
        acc_ref[...] += pointwise.reshape(groups, 8, C_pad).sum(axis=0)

        @pl.when(i == pl.num_programs(1) - 1)
        def _finalize():
            out_ref[0, 0] = jnp.sum(acc_ref[...]) * inv_denom

    return kernel


def _nce_kl_loss_pallas(xs, tile_b=None):
    B, C = xs.shape
    itemsize = jnp.dtype(xs.dtype).itemsize
    sub = 16 if itemsize == 2 else 8           # packed sublane granularity (bf16 vs f32)
    inv_denom = 1.0 / float(B * C)             # KLDivLoss(reduction='mean') divides by B*C

    vmem_cap = _vmem_capacity_bytes()
    max_buf_bytes = vmem_cap // 8              # one input pipeline buffer (double-buffered)
    vmem_limit = min(vmem_cap // 2, 100 * 1024 * 1024)

    # Pad C to a lane multiple so loads/adds are unmasked; zero columns contribute 0.
    C_pad = _round_up(C, 128)

    if tile_b is None:
        tile_b = _pick_tile_b(B, C_pad, itemsize, sub, max_buf_bytes)
    assert tile_b >= sub and tile_b % sub == 0, (
        "tile_b must be a multiple of the packed sublane granularity")

    # Pad B to a multiple of the row tile so the grouped VALU accumulation path is
    # always taken (no masked partial stores / per-step XLU reduces). Zero rows add 0.
    B_pad = _round_up(B, tile_b)
    num_tiles = B_pad // tile_b
    # 2-way "parallel" shard axis: uses both TensorCores on v7x / megacore parts,
    # degenerates to a harmless sequential outer loop of 2 on single-TC chips.
    num_shards = 2 if (num_tiles >= 2 and num_tiles % 2 == 0) else 1
    tiles_per_shard = num_tiles // num_shards

    if (B_pad, C_pad) != (B, C):
        xs = jnp.pad(xs, ((0, B_pad - B), (0, C_pad - C)))

    partials = pl.pallas_call(
        _build_kernel(C_pad, tile_b, inv_denom),
        out_shape=jax.ShapeDtypeStruct((num_shards, 1), jnp.float32),
        grid_spec=pltpu.PrefetchScalarGridSpec(
            num_scalar_prefetch=0,
            grid=(num_shards, tiles_per_shard),
            in_specs=[pl.BlockSpec(
                (tile_b, C_pad),
                lambda c, i: (c * tiles_per_shard + i, 0))],
            out_specs=pl.BlockSpec(
                (1, 1), lambda c, i: (c, 0),
                memory_space=pltpu.MemorySpace.SMEM),
            scratch_shapes=[pltpu.VMEM((8, C_pad), jnp.float32)],
        ),
        compiler_params=pltpu.CompilerParams(
            dimension_semantics=("parallel", "arbitrary"),
            vmem_limit_bytes=vmem_limit,
        ),
    )(xs)
    return jnp.sum(partials)


def nce_kl_loss(x, *, constant_fold=True, tile_b=None):
    """NCEKLLoss.forward. x: [B, C, 1, 1] (or already [B, C]); C must equal B.

    constant_fold=True (default, production path): the target is identically zero, so
    every pointwise KL term is exactly 0 and the mean is 0.0 — returned without reading
    x or launching a kernel. (Divergence: a NaN/Inf x would make PyTorch return NaN.)

    constant_fold=False: run the Pallas TPU streaming-reduction kernel, which computes
    the same quantity (0 for finite inputs) while preserving NaN/Inf propagation.
    Accepts f32 or bf16 input; accumulation is f32.
    """
    assert x.ndim >= 2, "input must be at least 2-D [B, C, ...]"
    B, C = x.shape[0], x.shape[1]
    for d in x.shape[2:]:
        assert d == 1, "trailing dims must be 1 (PyTorch squeezes them away)"
    # Explicit reshape instead of a bare squeeze so B == 1 or C == 1 does not collapse.
    xs = x.reshape(B, C)
    # PyTorch broadcasts the [B] zero target against [B, C]; only valid when C == B.
    assert C == B, "target [B] only broadcasts against [B, C] when C == B"

    if constant_fold:
        return jnp.zeros((), jnp.float32)
    return _nce_kl_loss_pallas(xs, tile_b=tile_b)


def _nce_kl_loss_ref(xs):
    """Pure-JAX reference of the PyTorch math (always 0.0 for finite inputs)."""
    lsm = jax.nn.log_softmax(xs.astype(jnp.float32), axis=1)
    t = jnp.zeros_like(lsm)
    pointwise = t * jnp.log(jnp.where(t > 0.0, t, 1.0)) - t * lsm
    return jnp.sum(pointwise) / pointwise.size


if __name__ == "__main__":
    key = jax.random.PRNGKey(0)
    B = 128  # info-NCE style B x B score matrix (C == B so the zero target broadcasts)
    x = jax.random.normal(key, (B, B, 1, 1), dtype=jnp.float32)

    # Default production path: no HBM read, no kernel launch.
    loss_folded = nce_kl_loss(x)

    # Full Pallas path with the default (single-tile) tiling for this small input.
    loss_kernel = jax.block_until_ready(nce_kl_loss(x, constant_fold=False))

    # Pipeline unit test: force a small row tile so the multi-step grid
    # (init / accumulate / finalize + 2-way parallel shard axis) is exercised.
    loss_tiled = jax.block_until_ready(nce_kl_loss(x, constant_fold=False, tile_b=32))

    # Padding-path unit test: B = C = 100 exercises the row/column zero padding.
    x_odd = jax.random.normal(jax.random.PRNGKey(1), (100, 100, 1, 1), jnp.float32)
    loss_pad = jax.block_until_ready(nce_kl_loss(x_odd, constant_fold=False))

    loss_ref = _nce_kl_loss_ref(x.reshape(B, B))

    assert jnp.isfinite(loss_kernel)
    assert abs(float(loss_kernel) - float(loss_ref)) < 1e-6
    assert abs(float(loss_tiled) - float(loss_ref)) < 1e-6
    assert float(loss_pad) == 0.0
    assert float(loss_kernel) == 0.0 and float(loss_folded) == 0.0

    print("KERNEL_OK")
</pallas_src>

<mosaic_0001>
module attributes {stable_mosaic.version = 11 : i64} {
  func.func @kernel(%arg0: i32, %arg1: i32, %arg2: memref<128x128xf32, #tpu.memory_space<vmem>>, %arg3: memref<1x1xf32, #tpu.memory_space<smem>>, %arg4: memref<8x128xf32, #tpu.memory_space<vmem>>) attributes {dimension_semantics = [#tpu.dimension_semantics<parallel>, #tpu.dimension_semantics<arbitrary>], iteration_bounds = array<i64: 1, 1>, scalar_prefetch = 0 : i64, scratch_operands = 1 : i64, tpu.core_type = #tpu.core_type<tc>, window_params = [{transform_indices = @transform_0, window_bounds = array<i64: 128, 128>}, {transform_indices = @transform_1, window_bounds = array<i64: 1, 1>}]} {
    %c0_i32 = arith.constant 0 : i32
    %0 = arith.cmpi eq, %arg1, %c0_i32 : i32
    %1 = arith.extui %0 : i1 to i32
    %c0_i32_0 = arith.constant 0 : i32
    %2 = arith.cmpi ne, %1, %c0_i32_0 : i32
    scf.if %2 {
      %cst_9 = arith.constant 0.000000e+00 : f32
      %14 = vector.broadcast %cst_9 : f32 to vector<8x128xf32>
      %c0_10 = arith.constant 0 : index
      %c0_11 = arith.constant 0 : index
      %15 = vector.load %arg4[%c0_10, %c0_11] : memref<8x128xf32, #tpu.memory_space<vmem>>, vector<8x128xf32>
      tpu.vector_store %arg4[%c0_10, %c0_11], %14 {strides = array<i32>} : memref<8x128xf32, #tpu.memory_space<vmem>>, vector<8x128xf32>,
    } else {
    }
    %c0 = arith.constant 0 : index
    %c0_1 = arith.constant 0 : index
    %3 = vector.load %arg2[%c0, %c0_1] : memref<128x128xf32, #tpu.memory_space<vmem>>, vector<128x128xf32>
    %cst = arith.constant 0.000000e+00 : f32
    %4 = vector.broadcast %cst : f32 to vector<128x128xf32>
    %5 = arith.mulf %4, %3 : vector<128x128xf32>
    %c0_2 = arith.constant 0 : index
    %c0_3 = arith.constant 0 : index
    %6 = vector.load %arg4[%c0_2, %c0_3] : memref<8x128xf32, #tpu.memory_space<vmem>>, vector<8x128xf32>
    %7 = vector.shape_cast %5 : vector<128x128xf32> to vector<16x8x128xf32>
    %cst_4 = arith.constant dense<0.000000e+00> : vector<8x128xf32>
    %8 = vector.multi_reduction <add>, %7, %cst_4 [0] : vector<16x8x128xf32> to vector<8x128xf32>
    %9 = arith.addf %6, %8 : vector<8x128xf32>
    %c0_5 = arith.constant 0 : index
    %c0_6 = arith.constant 0 : index
    %10 = vector.load %arg4[%c0_5, %c0_6] : memref<8x128xf32, #tpu.memory_space<vmem>>, vector<8x128xf32>
    tpu.vector_store %arg4[%c0_5, %c0_6], %9 {strides = array<i32>} : memref<8x128xf32, #tpu.memory_space<vmem>>, vector<8x128xf32>,
    %c0_i32_7 = arith.constant 0 : i32
    %11 = arith.cmpi eq, %arg1, %c0_i32_7 : i32
    %12 = arith.extui %11 : i1 to i32
    %c0_i32_8 = arith.constant 0 : i32
    %13 = arith.cmpi ne, %12, %c0_i32_8 : i32
    scf.if %13 {
      %c0_9 = arith.constant 0 : index
      %c0_10 = arith.constant 0 : index
      %14 = vector.load %arg4[%c0_9, %c0_10] : memref<8x128xf32, #tpu.memory_space<vmem>>, vector<8x128xf32>
      %15 = vector.shape_cast %14 : vector<8x128xf32> to vector<1x8x128xf32>
      %cst_11 = arith.constant dense<0.000000e+00> : vector<1xf32>
      %16 = vector.multi_reduction <add>, %15, %cst_11 [1, 2] : vector<1x8x128xf32> to vector<1xf32>
      %17 = vector.shape_cast %16 : vector<1xf32> to vector<1x1x1xf32>
      %18 = vector.extract %17[0, 0, 0] : f32 from vector<1x1x1xf32>
      %cst_12 = arith.constant 6.10351563E-5 : f32
      %19 = arith.mulf %18, %cst_12 : f32
      %c0_13 = arith.constant 0 : index
      %c0_14 = arith.constant 0 : index
      %20 = memref.load %arg3[%c0_13, %c0_14] : memref<1x1xf32, #tpu.memory_space<smem>>
      memref.store %19, %arg3[%c0_13, %c0_14] : memref<1x1xf32, #tpu.memory_space<smem>>
    } else {
    }
    return
  }
  func.func @transform_0(%arg0: i32, %arg1: i32) -> (i32, i32) {
    %c1_i32 = arith.constant 1 : i32
    %0 = arith.muli %arg0, %c1_i32 : i32
    %1 = arith.addi %0, %arg1 : i32
    %c0_i32 = arith.constant 0 : i32
    %c0_i32_0 = arith.constant 0 : i32
    return %1, %c0_i32 : i32, i32
  }
  func.func @transform_1(%arg0: i32, %arg1: i32) -> (i32, i32) {
    %c0_i32 = arith.constant 0 : i32
    %c0_i32_0 = arith.constant 0 : i32
    return %arg0, %c0_i32 : i32, i32
  }
}

</mosaic_0001>

<llo_original>
// kernel: tpu_custom_call.1
$region0: #{tpu_custom_call.1}
  #allocation0 [shape = 'u32[]', space=smem, size = 0x4, offset = 0x4, fixed_abs, tag = 'smem constant byte address 0x4 - core index']
  #allocation1 [shape = 'u32[72,128]{1,0:T(1,128)}', space=vmem, size = 0x9000, scoped, tag = 'internal scratch']
  #allocation2 [shape = 'f32[8,128]{1,0:T(8,128)}', space=vmem, size = 0x1000, scoped, tag = 'scratch operand']
  %s0 = inlined_call_operand.hbm [shape: f32[128,128], index: 0, kind: input, shape index: {}]
  %s1 = inlined_call_operand.hbm [shape: f32[1,1], index: 1, kind: output, shape index: {}]
  %s2 = sld [smem:[#allocation0]]
  $region26: #{tpu_custom_call.1} parent=0
    _
  %s4 = ssub.s32 1, %s2
  %s5 = scalar_select 0, %s4, %s2
  $region1: #{tpu_custom_call.1} parent=0
    #allocation3 [shape = 'u8[65536]{0}', space=vmem, size = 0x10000, scoped, tag = 'input window, operand 0, single buffered']
    #allocation4 [shape = 's32[1]{0}', space=sflag, size = 0x4, scoped, tag = 'scoped memory for tpu_custom_call.1']
    #allocation5 [shape = 's32[1]{0}', space=sflag, size = 0x4, scoped, tag = 'scoped memory for tpu_custom_call.1']
    #allocation6 [shape = 'u8[512]{0}', space=smem, size = 0x200, scoped, tag = 'output window, operand 0, single buffered']
    %6 = vsyncpa [#allocation4], 0
    %7 = vsyncpa [#allocation5], 0
    // Predicated region
    $region2: #{tpu_custom_call.1} parent=1 // pred_check
      _
    $region3: #{tpu_custom_call.1} parent=1 // pred_check_branch
      %9 = sbr.rel (0) target = $region5
    $region4: #{tpu_custom_call.1} parent=1 // pred_region
      %s10 = sadd.s32 0, 0
      %s11 = smul.u32 16, %s10
      %13 = vsyncadd [#allocation4], 0
      %s14 = smul.addr %s11, 8
      %s15 = scalar_lea.hbm %s0, %s14
      %s16 = sshll.u32 %s15, 4
      %s17 = int_to_ptr.hbm [resolvable:$true] %s16
      %s18 = sshll.u32 [#allocation3], 4
      %s19 = int_to_ptr.vmem [resolvable:$true] %s18
      %24 = dma.hbm_to_vmem [thread:$0]  %s17, 2048, %s19, [#allocation4], 128, 128, 8
    $region5: #{tpu_custom_call.1} parent=1 // pred_fallthru
      _
    // Predicated region
    $region6: #{tpu_custom_call.1} parent=1 // pred_check
      _
    $region7: #{tpu_custom_call.1} parent=1 // pred_check_branch
      %26 = sbr.rel (0) target = $region9
    $region8: #{tpu_custom_call.1} parent=1 // pred_region
      %28 = dma.done [#allocation4], 2048
    $region9: #{tpu_custom_call.1} parent=1 // pred_fallthru
      _
    %s29 = sadd.s32 0, 0
    %s30 = smul.u32 16, %s29
    %p31 = scmp.eq.s32.totalorder 0, 0
    // Predicated region
    $region10: #{tpu_custom_call.1} parent=1 // pred_check
      %p32 = pneg %p31
    $region11: #{tpu_custom_call.1} parent=1 // pred_check_branch
      %34 = sbr.rel (%p32) target = $region13
    $region12: #{tpu_custom_call.1} parent=1 // pred_region
      %35 = vst [vmem:[#allocation2] sm:$0xff] 0.0
    $region13: #{tpu_custom_call.1} parent=1 // pred_fallthru
      _
    %v36 = vld [vmem:[#allocation3] sm:$0xff]
    %v37 = vld [vmem:[#allocation3 + $0x8] sm:$0xff]
    %v38 = vld [vmem:[#allocation3 + $0x10] sm:$0xff]
    %v39 = vld [vmem:[#allocation3 + $0x18] sm:$0xff]
    %v40 = vld [vmem:[#allocation3 + $0x20] sm:$0xff]
    %v41 = vld [vmem:[#allocation3 + $0x28] sm:$0xff]
    %v42 = vld [vmem:[#allocation3 + $0x30] sm:$0xff]
    %v43 = vld [vmem:[#allocation3 + $0x38] sm:$0xff]
    %v44 = vld [vmem:[#allocation3 + $0x40] sm:$0xff]
    %v45 = vld [vmem:[#allocation3 + $0x48] sm:$0xff]
    %v46 = vld [vmem:[#allocation3 + $0x50] sm:$0xff]
    %v47 = vld [vmem:[#allocation3 + $0x58] sm:$0xff]
    %v48 = vld [vmem:[#allocation3 + $0x60] sm:$0xff]
    %v49 = vld [vmem:[#allocation3 + $0x68] sm:$0xff]
    %v50 = vld [vmem:[#allocation3 + $0x70] sm:$0xff]
    %v51 = vld [vmem:[#allocation3 + $0x78] sm:$0xff]
    %v52 = vmul.f32 %v36, 0.0
    %v53 = vmul.f32 %v37, 0.0
    %v54 = vmul.f32 %v38, 0.0
    %v55 = vmul.f32 %v39, 0.0
    %v56 = vmul.f32 %v40, 0.0
    %v57 = vmul.f32 %v41, 0.0
    %v58 = vmul.f32 %v42, 0.0
    %v59 = vmul.f32 %v43, 0.0
    %v60 = vmul.f32 %v44, 0.0
    %v61 = vmul.f32 %v45, 0.0
    %v62 = vmul.f32 %v46, 0.0
    %v63 = vmul.f32 %v47, 0.0
    %v64 = vmul.f32 %v48, 0.0
    %v65 = vmul.f32 %v49, 0.0
    %v66 = vmul.f32 %v50, 0.0
    %v67 = vmul.f32 %v51, 0.0
    %v68 = vld [vmem:[#allocation2] sm:$0xff]
    %v69 = vadd.f32 %v52, %v53
    %v70 = vadd.f32 %v69, %v54
    %v71 = vadd.f32 %v70, %v55
    %v72 = vadd.f32 %v71, %v56
    %v73 = vadd.f32 %v72, %v57
    %v74 = vadd.f32 %v73, %v58
    %v75 = vadd.f32 %v74, %v59
    %v76 = vadd.f32 %v75, %v60
    %v77 = vadd.f32 %v76, %v61
    %v78 = vadd.f32 %v77, %v62
    %v79 = vadd.f32 %v78, %v63
    %v80 = vadd.f32 %v79, %v64
    %v81 = vadd.f32 %v80, %v65
    %v82 = vadd.f32 %v81, %v66
    %v83 = vadd.f32 %v82, %v67
    %v84 = vadd.f32 %v68, %v83
    %85 = vst [vmem:[#allocation2] sm:$0xff] %v84
    // Predicated region
    $region14: #{tpu_custom_call.1} parent=1 // pred_check
      %p86 = pneg %p31
    $region15: #{tpu_custom_call.1} parent=1 // pred_check_branch
      %88 = sbr.rel (%p86) target = $region17
    $region16: #{tpu_custom_call.1} parent=1 // pred_region
      %v89 = vld [vmem:[#allocation2] sm:$0xff]
      %90 = vadd.xlane.f32.xlu0 %v89
      %v91 = vpop.xlane.xlu0 %90
      %v92 = vrot.slane %v91, 4
      %v93 = vadd.f32 %v91, %v92
      %v94 = vrot.slane %v93, 2
      %v95 = vadd.f32 %v93, %v94
      %v96 = vrot.slane %v95, 1
      %v97 = vadd.f32 %v95, %v96
      %s98 = vtos %v97
      %s99 = smul.f32 %s98, 6.1035156e-05
      %s100 = scalar_lea.smem [#allocation6], 0
      %101 = sst [smem:[%s100]] %s99
    $region17: #{tpu_custom_call.1} parent=1 // pred_fallthru
      _
    // Predicated region
    $region18: #{tpu_custom_call.1} parent=1 // pred_check
      _
    $region19: #{tpu_custom_call.1} parent=1 // pred_check_branch
      %103 = sbr.rel (0) target = $region21
    $region20: #{tpu_custom_call.1} parent=1 // pred_region
      %105 = vsyncadd [#allocation5], 0
      %s107 = sshll.u32 %s1, 4
      %s108 = int_to_ptr.hbm [resolvable:$true] %s107
      %110 = dma.smem_to_hbm [#allocation6], 16, %s108, [#allocation5]
    $region21: #{tpu_custom_call.1} parent=1 // pred_fallthru
      _
    // Predicated region
    $region22: #{tpu_custom_call.1} parent=1 // pred_check
      _
    $region23: #{tpu_custom_call.1} parent=1 // pred_check_branch
      %112 = sbr.rel (0) target = $region25
    $region24: #{tpu_custom_call.1} parent=1 // pred_region
      %114 = dma.done [#allocation5], 16
    $region25: #{tpu_custom_call.1} parent=1 // pred_fallthru
      _
    %115 = sfence
    %116 = vsyncpa [#allocation4], 1
    %117 = vsyncpa [#allocation5], 1

</llo_original>
